<compile_context>
chip_gen: v7x
topology: tpu7x:2x2x1
jax: 0.10.0
libtpu: 0.0.40
codegen_flags: <defaults>
</compile_context>

<pallas_src>
import functools

import jax
import jax.numpy as jnp
from jax.experimental import pallas as pl
from jax.experimental.pallas import tpu as pltpu


def _round_up(x, m):
    return (x + m - 1) // m * m


def _propagate_kernel(adj_ref, emb_ref, out_ref, *, tk):
    """One (row-tile, k-tile) step of out = adj @ emb.

    adj_ref : (tm, tk) bf16 tile of the adjacency matrix
    emb_ref : (Np, D)  bf16, fully VMEM-resident embedding matrix
    out_ref : (tm, D)  f32 output tile, resident across the k (reduction) axis
    """
    k = pl.program_id(1)

    @pl.when(k == 0)
    def _():
        out_ref[...] = jnp.zeros_like(out_ref)

    start = pl.multiple_of(k * tk, tk)
    out_ref[...] += jnp.dot(
        adj_ref[...],
        emb_ref[pl.ds(start, tk), :],
        preferred_element_type=jnp.float32,
    )


@functools.partial(jax.jit, static_argnames=("tm", "tk"))
def lightgcn_propagate(adj_bf16, emb_bf16, *, tm, tk):
    """Dense equivalent of torch.sparse.mm(adj_matrix, all_embeddings).

    Inputs are bf16 (traffic), accumulation and output are f32 (precision).
    Shapes must already be padded to multiples of (tm, tk).
    """
    Np, Kp = adj_bf16.shape
    _, D = emb_bf16.shape
    assert Np % tm == 0 and Kp % tk == 0

    kernel = functools.partial(_propagate_kernel, tk=tk)

    # Double-buffered adj tiles + resident embedding + resident f32 out block.
    vmem_limit = int(2 * tm * tk * 2 + 2 * Kp * D * 2 + 2 * tm * D * 4) + (8 << 20)
    vmem_limit = min(vmem_limit, 48 << 20)

    return pl.pallas_call(
        kernel,
        out_shape=jax.ShapeDtypeStruct((Np, D), jnp.float32),
        grid_spec=pltpu.PrefetchScalarGridSpec(
            num_scalar_prefetch=0,
            grid=(Np // tm, Kp // tk),
            in_specs=[
                # Streaming adjacency tile (the dominant HBM traffic).
                pl.BlockSpec((tm, tk), lambda i, k: (i, k)),
                # Full embedding matrix, VMEM-resident (constant block index
                # -> DMA'd only once for the whole grid).
                pl.BlockSpec((Kp, D), lambda i, k: (0, 0)),
            ],
            # Same output block for all k -> resident f32 accumulator.
            out_specs=pl.BlockSpec((tm, D), lambda i, k: (i, 0)),
        ),
        compiler_params=pltpu.CompilerParams(
            dimension_semantics=("parallel", "arbitrary"),
            vmem_limit_bytes=vmem_limit,
        ),
    )(adj_bf16, emb_bf16)


def lightgcn_forward(adj, user_emb, item_emb, n_layers, *, tile=512):
    """Reproduces LightGCN.forward: layer propagation + mean over layers + split."""
    n_users = user_emb.shape[0]
    all_emb = jnp.concatenate([user_emb, item_emb], axis=0).astype(jnp.float32)
    N, D = all_emb.shape
    assert adj.shape == (N, N)

    # Pick tile sizes and pad to a clean multiple (zero rows/cols are inert).
    if N <= tile:
        Np = _round_up(N, 128)
        tm = tk = Np
    else:
        tm = tk = tile
        Np = _round_up(N, tile)
    pad = Np - N

    adj_bf16 = jnp.pad(adj, ((0, pad), (0, pad))).astype(jnp.bfloat16)  # cast once
    emb = jnp.pad(all_emb, ((0, pad), (0, 0)))

    acc = emb          # running layer sum, kept in f32
    cur = emb
    for _ in range(n_layers):
        cur = lightgcn_propagate(adj_bf16, cur.astype(jnp.bfloat16), tm=tm, tk=tk)
        acc = acc + cur
    mean_emb = (acc / jnp.float32(n_layers + 1))[:N]

    return mean_emb[:n_users], mean_emb[n_users:]


if __name__ == "__main__":
    # Small, deterministic synthetic setup. N = 236 is deliberately NOT a tile
    # multiple (exercises padding) and tile=128 gives a 2x2 grid (exercises the
    # pipelined reduction / accumulator path).
    n_users, n_items = 96, 140
    n_layers = 3
    embedding_dim = 32
    N = n_users + n_items

    key = jax.random.PRNGKey(0)
    k_u, k_i, k_a = jax.random.split(key, 3)

    # nn.init.normal_(std=0.1) equivalents.
    user_emb = 0.1 * jax.random.normal(k_u, (n_users, embedding_dim), dtype=jnp.float32)
    item_emb = 0.1 * jax.random.normal(k_i, (n_items, embedding_dim), dtype=jnp.float32)

    # Symmetric-normalized bipartite adjacency (dense stand-in for the sparse matrix).
    inter = (jax.random.uniform(k_a, (n_users, n_items)) < 0.05).astype(jnp.float32)
    adj = jnp.zeros((N, N), dtype=jnp.float32)
    adj = adj.at[:n_users, n_users:].set(inter)
    adj = adj.at[n_users:, :n_users].set(inter.T)
    deg = jnp.clip(adj.sum(axis=1), 1.0, None)
    d_inv_sqrt = 1.0 / jnp.sqrt(deg)
    adj = adj * d_inv_sqrt[:, None] * d_inv_sqrt[None, :]

    users_out, items_out = lightgcn_forward(adj, user_emb, item_emb, n_layers, tile=128)
    users_out = jax.block_until_ready(users_out)
    items_out = jax.block_until_ready(items_out)

    # Reference check in plain JAX (f32). Tolerance loosened because the kernel
    # quantizes adj / emb to bf16 (f32 accumulation).
    all_emb = jnp.concatenate([user_emb, item_emb], axis=0)
    ref_list = [all_emb]
    cur = all_emb
    for _ in range(n_layers):
        cur = adj @ cur
        ref_list.append(cur)
    ref = jnp.stack(ref_list, axis=1).mean(axis=1)
    assert users_out.shape == (n_users, embedding_dim)
    assert items_out.shape == (n_items, embedding_dim)
    assert jnp.allclose(users_out, ref[:n_users], atol=2e-3, rtol=2e-2)
    assert jnp.allclose(items_out, ref[n_users:], atol=2e-3, rtol=2e-2)

    print("KERNEL_OK")
</pallas_src>

<mosaic_0001>
module attributes {stable_mosaic.version = 11 : i64} {
  func.func @_propagate_kernel(%arg0: i32, %arg1: i32, %arg2: memref<128x128xbf16, #tpu.memory_space<vmem>>, %arg3: memref<256x32xbf16, #tpu.memory_space<vmem>>, %arg4: memref<128x32xf32, #tpu.memory_space<vmem>>) attributes {dimension_semantics = [#tpu.dimension_semantics<parallel>, #tpu.dimension_semantics<arbitrary>], iteration_bounds = array<i64: 2, 2>, scalar_prefetch = 0 : i64, scratch_operands = 0 : i64, tpu.core_type = #tpu.core_type<tc>, window_params = [{transform_indices = @transform_0, window_bounds = array<i64: 128, 128>}, {pipeline_mode = #tpu.pipeline_mode<synchronous>, transform_indices = @transform_1, window_bounds = array<i64: 256, 32>}, {transform_indices = @transform_2, window_bounds = array<i64: 128, 32>}]} {
    %c0_i32 = arith.constant 0 : i32
    %0 = arith.cmpi eq, %arg1, %c0_i32 : i32
    %1 = arith.extui %0 : i1 to i32
    %c0_i32_0 = arith.constant 0 : i32
    %2 = arith.cmpi ne, %1, %c0_i32_0 : i32
    scf.if %2 {
      %cst_7 = arith.constant 0.000000e+00 : f32
      %12 = vector.broadcast %cst_7 : f32 to vector<128x32xf32>
      %c0_8 = arith.constant 0 : index
      %c0_9 = arith.constant 0 : index
      %13 = vector.load %arg4[%c0_8, %c0_9] : memref<128x32xf32, #tpu.memory_space<vmem>>, vector<128x32xf32>
      tpu.vector_store %arg4[%c0_8, %c0_9], %12 {strides = array<i32>} : memref<128x32xf32, #tpu.memory_space<vmem>>, vector<128x32xf32>,
    } else {
    }
    %c128_i32 = arith.constant 128 : i32
    %3 = arith.muli %arg1, %c128_i32 : i32
    %4 = tpu.assume_multiple %3, 128 : i32
    %c0 = arith.constant 0 : index
    %c0_1 = arith.constant 0 : index
    %5 = vector.load %arg4[%c0, %c0_1] : memref<128x32xf32, #tpu.memory_space<vmem>>, vector<128x32xf32>
    %c0_2 = arith.constant 0 : index
    %c0_3 = arith.constant 0 : index
    %6 = vector.load %arg2[%c0_2, %c0_3] : memref<128x128xbf16, #tpu.memory_space<vmem>>, vector<128x128xbf16>
    %7 = arith.index_cast %4 : i32 to index
    %c0_4 = arith.constant 0 : index
    %8 = vector.load %arg3[%7, %c0_4] : memref<256x32xbf16, #tpu.memory_space<vmem>>, vector<128x32xbf16>
    %cst = arith.constant dense<0.000000e+00> : vector<128x32xf32>
    %9 = tpu.matmul %6, %8, %cst {dimension_numbers = #tpu.dot_dimension_numbers<[1], [0], [0], [1], [0, 0, 1, 1], [], []>} : vector<128x128xbf16>, vector<128x32xbf16>, vector<128x32xf32> -> vector<128x32xf32>
    %10 = arith.addf %5, %9 : vector<128x32xf32>
    %c0_5 = arith.constant 0 : index
    %c0_6 = arith.constant 0 : index
    %11 = vector.load %arg4[%c0_5, %c0_6] : memref<128x32xf32, #tpu.memory_space<vmem>>, vector<128x32xf32>
    tpu.vector_store %arg4[%c0_5, %c0_6], %10 {strides = array<i32>} : memref<128x32xf32, #tpu.memory_space<vmem>>, vector<128x32xf32>,
    return
  }
  func.func @transform_0(%arg0: i32, %arg1: i32) -> (i32, i32) {
    %c0_i32 = arith.constant 0 : i32
    return %arg0, %arg1 : i32, i32
  }
  func.func @transform_1(%arg0: i32, %arg1: i32) -> (i32, i32) {
    %c0_i32 = arith.constant 0 : i32
    %c0_i32_0 = arith.constant 0 : i32
    %c0_i32_1 = arith.constant 0 : i32
    return %c0_i32, %c0_i32_0 : i32, i32
  }
  func.func @transform_2(%arg0: i32, %arg1: i32) -> (i32, i32) {
    %c0_i32 = arith.constant 0 : i32
    %c0_i32_0 = arith.constant 0 : i32
    return %arg0, %c0_i32 : i32, i32
  }
}

</mosaic_0001>

<llo_original>
// kernel: lightgcn_propagate.1
$region0: #{lightgcn_propagate.1}
  #allocation0 [shape = 'u32[]', space=smem, size = 0x4, offset = 0x4, fixed_abs, tag = 'smem constant byte address 0x4 - core index']
  #allocation1 [shape = 'u32[144,128]{1,0:T(1,128)}', space=vmem, size = 0x12000, scoped, tag = 'internal scratch']
  %s0 = inlined_call_operand.hbm [shape: bf16[256,256], index: 0, kind: input, shape index: {}]
  %s1 = inlined_call_operand.vmem [shape: bf16[256,32], index: 1, kind: input, shape index: {}]
  %s2 = inlined_call_operand.vmem [shape: f32[256,32], index: 2, kind: output, shape index: {}]
  %s3 = sld [smem:[#allocation0]]
  $region49: #{lightgcn_propagate.1} parent=0
    _
  %s5 = ssub.s32 1, %s3
  %s6 = scalar_select 0, %s5, %s3
  $region1: #{lightgcn_propagate.1} parent=0
    #allocation2 [shape = 'u8[65536]{0}', space=vmem, size = 0x10000, scoped, tag = 'input window, operand 0']
    #allocation3 [shape = 's32[2]{0}', space=sflag, size = 0x8, scoped, tag = 'scoped memory for lightgcn_propagate.1']
    %7 = vsyncpa [#allocation3], 0
    %s8 = scalar_lea.sflag [#allocation3], 1
    %9 = vsyncpa %s8, 0
    loop: start=0, step=1, limit=6
    $region2: #{lightgcn_propagate.1} parent=1 // loop_pre_header
      _
    $region3: #{lightgcn_propagate.1} parent=1 // loop_header
      %s11 = sphi 0, %s15
      %p12 = scmp.ge.s32.totalorder %s11, 6
      %s18 = sphi 0, %s30
      %s19 = sphi 0, %s26
      %s20 = sphi 0, %s18
      %s21 = sphi 0, %s19
      %s22 = sphi 0, %s20
      %s23 = sphi 0, %s21
      %s35 = sphi 0, %s37
      %s38 = sphi 0, %s35
      %s39 = sphi 0, %s38
      %s55 = sphi 0, %s39
      %s59 = sphi 0, %s59
      %s61 = sphi 0, %s59
      %s62 = sphi 0, %s61
      %s76 = sphi 0, %s62
      %s82 = sphi 0, %s84
      %s85 = sphi 0, %s82
      %s86 = sphi 0, %s85
      %s102 = sphi 0, %s86
    $region4: #{lightgcn_propagate.1} parent=1 // loop_header_branch
      %14 = sbr.rel (%p12) target = $region8
    $region5: #{lightgcn_propagate.1} parent=1 // loop_body
      %s16 = ssub.s32 %s11, 1
      %s17 = ssub.s32 %s11, 2
      %s24 = sadd.s32 1, %s19
      %p25 = scmp.ge.s32.totalorder %s24, 2
      %s26 = scalar_select %p25, 0, %s24
      %s27 = sadd.s32 1, %s18
      %s28 = scalar_select %p25, %s27, %s18
      %p29 = scmp.ge.s32.totalorder %s28, 2
      %s30 = scalar_select %p29, 0, %s28
      %s31 = ssub.s32 %s18, %s30
      %s32 = ssub.s32 %s19, %s26
      %s33 = sor.u32 %s31, %s32
      %p34 = scmp.eq.s32.totalorder %s33, 0
      %s36 = sadd.s32 %s35, 1
      %s37 = scalar_select %p34, %s35, %s36
      %p40 = pneg %p34
      %p41 = scmp.eq.s32.totalorder %s11, 3
      %p42 = por %p40, %p41
      %p43 = scmp.ne.s32.totalorder %s35, %s38
      %p44 = scmp.eq.s32.totalorder %s11, 0
      %p45 = por %p43, %p44
      %p46 = scmp.ne.s32.totalorder %s35, %s38
      %p47 = scmp.eq.s32.totalorder %s16, 3
      %p48 = por %p46, %p47
      %p49 = scmp.ne.s32.totalorder %s38, %s39
      %p50 = scmp.eq.s32.totalorder %s16, 0
      %p51 = por %p49, %p50
      %p52 = scmp.ne.s32.totalorder %s38, %s39
      %p53 = scmp.eq.s32.totalorder %s17, 3
      %p54 = por %p52, %p53
      %p56 = scmp.ne.s32.totalorder %s39, %s55
      %p57 = scmp.eq.s32.totalorder %s17, 0
      %p58 = por %p56, %p57
      %s60 = sadd.s32 %s59, 1
      %p63 = scmp.eq.s32.totalorder %s11, 3
      %p64 = scmp.ne.s32.totalorder %s59, %s61
      %p65 = scmp.eq.s32.totalorder %s11, 0
      %p66 = por %p64, %p65
      %p67 = scmp.ne.s32.totalorder %s59, %s61
      %p68 = scmp.eq.s32.totalorder %s16, 3
      %p69 = por %p67, %p68
      %p70 = scmp.ne.s32.totalorder %s61, %s62
      %p71 = scmp.eq.s32.totalorder %s16, 0
      %p72 = por %p70, %p71
      %p73 = scmp.ne.s32.totalorder %s61, %s62
      %p74 = scmp.eq.s32.totalorder %s17, 3
      %p75 = por %p73, %p74
      %p77 = scmp.ne.s32.totalorder %s62, %s76
      %p78 = scmp.eq.s32.totalorder %s17, 0
      %p79 = por %p77, %p78
      %s80 = ssub.s32 %s18, %s30
      %p81 = scmp.eq.s32.totalorder %s80, 0
      %s83 = sadd.s32 %s82, 1
      %s84 = scalar_select %p81, %s82, %s83
      %p87 = pneg %p81
      %p88 = scmp.eq.s32.totalorder %s11, 3
      %p89 = por %p87, %p88
      %p90 = scmp.ne.s32.totalorder %s82, %s85
      %p91 = scmp.eq.s32.totalorder %s11, 0
      %p92 = por %p90, %p91
      %p93 = scmp.ne.s32.totalorder %s82, %s85
      %p94 = scmp.eq.s32.totalorder %s16, 3
      %p95 = por %p93, %p94
      %p96 = scmp.ne.s32.totalorder %s85, %s86
      %p97 = scmp.eq.s32.totalorder %s16, 0
      %p98 = por %p96, %p97
      %p99 = scmp.ne.s32.totalorder %s85, %s86
      %p100 = scmp.eq.s32.totalorder %s17, 3
      %p101 = por %p99, %p100
      %p103 = scmp.ne.s32.totalorder %s86, %s102
      %p104 = scmp.eq.s32.totalorder %s17, 0
      %p105 = por %p103, %p104
      %p106 = scmp.le.s32.totalorder 1, %s11
      %p107 = scmp.lt.s32.totalorder %s11, 5
      %p108 = pnand %p106, %p107
      %p109 = pneg %p108
      // Predicated region
      $region9: #{lightgcn_propagate.1} parent=5 // pred_check
        _
      $region10: #{lightgcn_propagate.1} parent=5 // pred_check_branch
        %111 = sbr.rel (%p108) target = $region12
      $region11: #{lightgcn_propagate.1} parent=5 // pred_region
        %s112 = ssub.s32 %s11, 1
        // Predicated region
        $region13: #{lightgcn_propagate.1} parent=11 // pred_check
          %p113 = pneg %p72
        $region14: #{lightgcn_propagate.1} parent=11 // pred_check_branch
          %115 = sbr.rel (%p113) target = $region16
        $region15: #{lightgcn_propagate.1} parent=11 // pred_region
          _
        $region16: #{lightgcn_propagate.1} parent=11 // pred_fallthru
          _
      $region12: #{lightgcn_propagate.1} parent=5 // pred_fallthru
        _
      %p116 = scmp.lt.s32.totalorder %s11, 4
      // Predicated region
      $region17: #{lightgcn_propagate.1} parent=5 // pred_check
        %p117 = pneg %p116
      $region18: #{lightgcn_propagate.1} parent=5 // pred_check_branch
        %119 = sbr.rel (%p117) target = $region20
      $region19: #{lightgcn_propagate.1} parent=5 // pred_region
        // Predicated region
        $region21: #{lightgcn_propagate.1} parent=19 // pred_check
          %p120 = pneg %p45
        $region22: #{lightgcn_propagate.1} parent=19 // pred_check_branch
          %122 = sbr.rel (%p120) target = $region24
        $region23: #{lightgcn_propagate.1} parent=19 // pred_region
          %s123 = sand.u32 %s35, 1
          %s124 = scalar_lea.sflag [#allocation3], %s123
          %s125 = sand.u32 %s35, 1
          %s126 = smul.addr %s125, 64
          %s127 = scalar_lea.vmem [#allocation2], %s126
          %s128 = smul.u32 16, %s18
          %s130 = ssub.s32 1024, 1024
          %131 = vsyncadd %s124, %s130
          %s132 = smul.addr %s128, 2
          %s133 = sadd.s32 %s19, %s132
          %s134 = smul.addr %s133, 64
          %s135 = scalar_lea.hbm %s0, %s134
          %s136 = sshll.u32 %s127, 4
          %s137 = int_to_ptr.vmem [resolvable:$true] %s136
          %142 = dma.hbm_to_vmem [thread:$0]  %s135, 1024, %s137, %s124, 128, 64, 4
        $region24: #{lightgcn_propagate.1} parent=19 // pred_fallthru
          _
      $region20: #{lightgcn_propagate.1} parent=5 // pred_fallthru
        _
      %p143 = scmp.le.s32.totalorder 1, %s11
      %p144 = scmp.lt.s32.totalorder %s11, 5
      %p145 = pnand %p143, %p144
      %p146 = pneg %p145
      // Predicated region
      $region25: #{lightgcn_propagate.1} parent=5 // pred_check
        _
      $region26: #{lightgcn_propagate.1} parent=5 // pred_check_branch
        %148 = sbr.rel (%p145) target = $region28
      $region27: #{lightgcn_propagate.1} parent=5 // pred_region
        %s149 = ssub.s32 %s11, 1
        %s150 = sand.u32 %s38, 1
        %s151 = scalar_lea.sflag [#allocation3], %s150
        %s152 = sand.u32 %s38, 1
        %s153 = smul.addr %s152, 64
        %s154 = scalar_lea.vmem [#allocation2], %s153
        // Predicated region
        $region29: #{lightgcn_propagate.1} parent=27 // pred_check
          %p155 = pneg %p51
        $region30: #{lightgcn_propagate.1} parent=27 // pred_check_branch
          %157 = sbr.rel (%p155) target = $region32
        $region31: #{lightgcn_propagate.1} parent=27 // pred_region
          %158 = dma.done %s151, 1024
        $region32: #{lightgcn_propagate.1} parent=27 // pred_fallthru
          _
        %s159 = sand.u32 %s38, 1
        %s160 = scalar_lea.sflag [#allocation3], %s159
        %s161 = sand.u32 %s38, 1
        %s162 = smul.addr %s161, 64
        %s163 = scalar_lea.vmem [#allocation2], %s162
        %p164 = pneg %p51
        %p165 = pneg %p48
        %p166 = pneg %p72
        %p167 = pneg %p69
        %p168 = pneg %p98
        %p169 = pneg %p95
        %s170 = smul.u32 16, %s20
        %p171 = scmp.lt.s32.totalorder %s170, 31
        %s172 = scalar_select %p171, %s170, 31
        %s173 = smul.addr %s172, 8
        %s174 = scalar_lea.vmem %s2, %s173
        %s175 = smul.u32 16, %s20
        %s176 = smul.u32 16, %s20
        %p177 = scmp.lt.s32.totalorder %s176, 31
        %s178 = scalar_select %p177, %s176, 31
        %s179 = smul.addr %s178, 8
        %s180 = scalar_lea.vmem %s2, %s179
        %s181 = smul.u32 16, %s20
        %p183 = scmp.eq.s32.totalorder %s21, 0
        // Predicated region
        $region33: #{lightgcn_propagate.1} parent=27 // pred_check
          %p184 = pneg %p183
        $region34: #{lightgcn_propagate.1} parent=27 // pred_check_branch
          %186 = sbr.rel (%p184) target = $region36
        $region35: #{lightgcn_propagate.1} parent=27 // pred_region
          %vm187 = vcmask 261120
          %188 = vst.msk [vmem:[%s180] sm:$0xff] %vm187, 0.0
          %189 = vst.msk [vmem:[%s180 + $0x8] sm:$0xff] %vm187, 0.0
          %190 = vst.msk [vmem:[%s180 + $0x10] sm:$0xff] %vm187, 0.0
          %191 = vst.msk [vmem:[%s180 + $0x18] sm:$0xff] %vm187, 0.0
          %192 = vst.msk [vmem:[%s180 + $0x20] sm:$0xff] %vm187, 0.0
          %193 = vst.msk [vmem:[%s180 + $0x28] sm:$0xff] %vm187, 0.0
          %194 = vst.msk [vmem:[%s180 + $0x30] sm:$0xff] %vm187, 0.0
          %195 = vst.msk [vmem:[%s180 + $0x38] sm:$0xff] %vm187, 0.0
          %196 = vst.msk [vmem:[%s180 + $0x40] sm:$0xff] %vm187, 0.0
          %197 = vst.msk [vmem:[%s180 + $0x48] sm:$0xff] %vm187, 0.0
          %198 = vst.msk [vmem:[%s180 + $0x50] sm:$0xff] %vm187, 0.0
          %199 = vst.msk [vmem:[%s180 + $0x58] sm:$0xff] %vm187, 0.0
          %200 = vst.msk [vmem:[%s180 + $0x60] sm:$0xff] %vm187, 0.0
          %201 = vst.msk [vmem:[%s180 + $0x68] sm:$0xff] %vm187, 0.0
          %202 = vst.msk [vmem:[%s180 + $0x70] sm:$0xff] %vm187, 0.0
          %203 = vst.msk [vmem:[%s180 + $0x78] sm:$0xff] %vm187, 0.0
        $region36: #{lightgcn_propagate.1} parent=27 // pred_fallthru
          _
        %s204 = smul.u32 %s21, 128
        %v205 = vld [vmem:[%s180] sm:$0xff]
        %v206 = vld [vmem:[%s180 + $0x8] sm:$0xff]
        %v207 = vld [vmem:[%s180 + $0x10] sm:$0xff]
        %v208 = vld [vmem:[%s180 + $0x18] sm:$0xff]
        %v209 = vld [vmem:[%s180 + $0x20] sm:$0xff]
        %v210 = vld [vmem:[%s180 + $0x28] sm:$0xff]
        %v211 = vld [vmem:[%s180 + $0x30] sm:$0xff]
        %v212 = vld [vmem:[%s180 + $0x38] sm:$0xff]
        %v213 = vld [vmem:[%s180 + $0x40] sm:$0xff]
        %v214 = vld [vmem:[%s180 + $0x48] sm:$0xff]
        %v215 = vld [vmem:[%s180 + $0x50] sm:$0xff]
        %v216 = vld [vmem:[%s180 + $0x58] sm:$0xff]
        %v217 = vld [vmem:[%s180 + $0x60] sm:$0xff]
        %v218 = vld [vmem:[%s180 + $0x68] sm:$0xff]
        %v219 = vld [vmem:[%s180 + $0x70] sm:$0xff]
        %v220 = vld [vmem:[%s180 + $0x78] sm:$0xff]
        %v221 = vld [vmem:[%s154] sm:$0xf]
        %v222 = vld [vmem:[%s154 + $0x4] sm:$0xf]
        %v223 = vld [vmem:[%s154 + $0x8] sm:$0xf]
        %v224 = vld [vmem:[%s154 + $0xc] sm:$0xf]
        %v225 = vld [vmem:[%s154 + $0x10] sm:$0xf]
        %v226 = vld [vmem:[%s154 + $0x14] sm:$0xf]
        %v227 = vld [vmem:[%s154 + $0x18] sm:$0xf]
        %v228 = vld [vmem:[%s154 + $0x1c] sm:$0xf]
        %v229 = vld [vmem:[%s154 + $0x20] sm:$0xf]
        %v230 = vld [vmem:[%s154 + $0x24] sm:$0xf]
        %v231 = vld [vmem:[%s154 + $0x28] sm:$0xf]
        %v232 = vld [vmem:[%s154 + $0x2c] sm:$0xf]
        %v233 = vld [vmem:[%s154 + $0x30] sm:$0xf]
        %v234 = vld [vmem:[%s154 + $0x34] sm:$0xf]
        %v235 = vld [vmem:[%s154 + $0x38] sm:$0xf]
        %v236 = vld [vmem:[%s154 + $0x3c] sm:$0xf]
        %s237 = sshra.s32 %s204, 3
        %s238 = sand.u32 %s204, 7
        %s239 = smul.addr %s237, 4
        %s240 = scalar_lea.vmem %s1, %s239
        %v241 = vld [vmem:[%s240] sm:$0xf]
        %v242 = vld [vmem:[%s240 + $0x4] sm:$0xf]
        %v243 = vld [vmem:[%s240 + $0x8] sm:$0xf]
        %v244 = vld [vmem:[%s240 + $0xc] sm:$0xf]
        %v245 = vld [vmem:[%s240 + $0x10] sm:$0xf]
        %v246 = vld [vmem:[%s240 + $0x14] sm:$0xf]
        %v247 = vld [vmem:[%s240 + $0x18] sm:$0xf]
        %v248 = vld [vmem:[%s240 + $0x1c] sm:$0xf]
        %v249 = vld [vmem:[%s240 + $0x20] sm:$0xf]
        %v250 = vld [vmem:[%s240 + $0x24] sm:$0xf]
        %v251 = vld [vmem:[%s240 + $0x28] sm:$0xf]
        %v252 = vld [vmem:[%s240 + $0x2c] sm:$0xf]
        %v253 = vld [vmem:[%s240 + $0x30] sm:$0xf]
        %v254 = vld [vmem:[%s240 + $0x34] sm:$0xf]
        %v255 = vld [vmem:[%s240 + $0x38] sm:$0xf]
        %v256 = vld [vmem:[%s240 + $0x3c] sm:$0xf]
        %v273 = vunpack.c.l.b16 %v221
        %v274 = vunpack.c.l.b16 %v222
        %v275 = vunpack.c.l.b16 %v223
        %v276 = vunpack.c.l.b16 %v224
        %v277 = vunpack.c.l.b16 %v225
        %v278 = vunpack.c.l.b16 %v226
        %v279 = vunpack.c.l.b16 %v227
        %v280 = vunpack.c.l.b16 %v228
        %v281 = vunpack.c.l.b16 %v229
        %v282 = vunpack.c.l.b16 %v230
        %v283 = vunpack.c.l.b16 %v231
        %v284 = vunpack.c.l.b16 %v232
        %v285 = vunpack.c.l.b16 %v233
        %v286 = vunpack.c.l.b16 %v234
        %v287 = vunpack.c.l.b16 %v235
        %v288 = vunpack.c.l.b16 %v236
        %v289 = vpack.c.b16 %v274, %v273
        %v290 = vpack.c.b16 %v276, %v275
        %v291 = vpack.c.b16 %v278, %v277
        %v292 = vpack.c.b16 %v280, %v279
        %v293 = vpack.c.b16 %v282, %v281
        %v294 = vpack.c.b16 %v284, %v283
        %v295 = vpack.c.b16 %v286, %v285
        %v296 = vpack.c.b16 %v288, %v287
        %v321 = vunpack.c.l.b16 %v241
        %v322 = vunpack.c.l.b16 %v242
        %v323 = vunpack.c.l.b16 %v243
        %v324 = vunpack.c.l.b16 %v244
        %v325 = vunpack.c.l.b16 %v245
        %v326 = vunpack.c.l.b16 %v246
        %v327 = vunpack.c.l.b16 %v247
        %v328 = vunpack.c.l.b16 %v248
        %v329 = vunpack.c.l.b16 %v249
        %v330 = vunpack.c.l.b16 %v250
        %v331 = vunpack.c.l.b16 %v251
        %v332 = vunpack.c.l.b16 %v252
        %v333 = vunpack.c.l.b16 %v253
        %v334 = vunpack.c.l.b16 %v254
        %v335 = vunpack.c.l.b16 %v255
        %v336 = vunpack.c.l.b16 %v256
        %v337 = vpack.c.b16 %v322, %v321
        %v338 = vpack.c.b16 %v324, %v323
        %v339 = vpack.c.b16 %v326, %v325
        %v340 = vpack.c.b16 %v328, %v327
        %v341 = vpack.c.b16 %v330, %v329
        %v342 = vpack.c.b16 %v332, %v331
        %v343 = vpack.c.b16 %v334, %v333
        %v344 = vpack.c.b16 %v336, %v335
        %353 = vmatprep.subr.bf16.mxu0 0
        %354 = vmatpush1.bf16.msra.mxu0 %v337
        %355 = vmatprep.subr.bf16.mxu0 0
        %356 = vmatpush1.bf16.msra.mxu0 %v338
        %357 = vmatprep.subr.bf16.mxu0 0
        %358 = vmatpush1.bf16.msra.mxu0 %v339
        %359 = vmatprep.subr.bf16.mxu0 0
        %360 = vmatpush1.bf16.msra.mxu0 %v340
        %361 = vmatprep.subr.bf16.mxu0 0
        %362 = vmatpush1.bf16.msra.mxu0 %v341
        %363 = vmatprep.subr.bf16.mxu0 0
        %364 = vmatpush1.bf16.msra.mxu0 %v342
        %365 = vmatprep.subr.bf16.mxu0 0
        %366 = vmatpush1.bf16.msra.mxu0 %v343
        %367 = vmatprep.subr.bf16.mxu0 0
        %368 = vmatpush1.bf16.msra.mxu0 %v344
        %369 = vmatprep.subr.bf16.mxu0 0
        %370 = vmatpush1.bf16.msra.mxu0 0
        %371 = vmatprep.subr.bf16.mxu0 0
        %372 = vmatpush1.bf16.msra.mxu0 0
        %373 = vmatprep.subr.bf16.mxu0 0
        %374 = vmatpush1.bf16.msra.mxu0 0
        %375 = vmatprep.subr.bf16.mxu0 0
        %376 = vmatpush1.bf16.msra.mxu0 0
        %377 = vmatprep.subr.bf16.mxu0 0
        %378 = vmatpush1.bf16.msra.mxu0 0
        %379 = vmatprep.subr.bf16.mxu0 0
        %380 = vmatpush1.bf16.msra.mxu0 0
        %381 = vmatprep.subr.bf16.mxu0 0
        %382 = vmatpush1.bf16.msra.mxu0 0
        %383 = vmatprep.subr.bf16.mxu0 0
        %384 = vmatpush1.bf16.msra.mxu0 0
        %385 = vmatprep.mubr.bf16.mxu0 0
        %386 = vmatmul.mubr.bf16.gmra.mrb[0].mxu0 %v289
        %v387 = vpop.f32.mrb[0].mxu0
        %v388 = vadd.f32 0.0, %v387
        %v389 = vpop.f32.mrb[0].mxu0
        %v390 = vpop.f32.mrb[0].mxu0
        %v391 = vadd.f32 0.0, %v390
        %v392 = vpop.f32.mrb[0].mxu0
        %393 = vmatprep.mubr.bf16.mxu0 0
        %394 = vmatmul.mubr.bf16.gmra.mrb[0].mxu0 %v290
        %v395 = vpop.f32.mrb[0].mxu0
        %v396 = vadd.f32 0.0, %v395
        %v397 = vpop.f32.mrb[0].mxu0
        %v398 = vpop.f32.mrb[0].mxu0
        %v399 = vadd.f32 0.0, %v398
        %v400 = vpop.f32.mrb[0].mxu0
        %401 = vmatprep.mubr.bf16.mxu0 0
        %402 = vmatmul.mubr.bf16.gmra.mrb[0].mxu0 %v291
        %v403 = vpop.f32.mrb[0].mxu0
        %v404 = vadd.f32 0.0, %v403
        %v405 = vpop.f32.mrb[0].mxu0
        %v406 = vpop.f32.mrb[0].mxu0
        %v407 = vadd.f32 0.0, %v406
        %v408 = vpop.f32.mrb[0].mxu0
        %409 = vmatprep.mubr.bf16.mxu0 0
        %410 = vmatmul.mubr.bf16.gmra.mrb[0].mxu0 %v292
        %v411 = vpop.f32.mrb[0].mxu0
        %v412 = vadd.f32 0.0, %v411
        %v413 = vpop.f32.mrb[0].mxu0
        %v414 = vpop.f32.mrb[0].mxu0
        %v415 = vadd.f32 0.0, %v414
        %v416 = vpop.f32.mrb[0].mxu0
        %417 = vmatprep.mubr.bf16.mxu0 0
        %418 = vmatmul.mubr.bf16.gmra.mrb[0].mxu0 %v293
        %v419 = vpop.f32.mrb[0].mxu0
        %v420 = vadd.f32 0.0, %v419
        %v421 = vpop.f32.mrb[0].mxu0
        %v422 = vpop.f32.mrb[0].mxu0
        %v423 = vadd.f32 0.0, %v422
        %v424 = vpop.f32.mrb[0].mxu0
        %425 = vmatprep.mubr.bf16.mxu0 0
        %426 = vmatmul.mubr.bf16.gmra.mrb[0].mxu0 %v294
        %v427 = vpop.f32.mrb[0].mxu0
        %v428 = vadd.f32 0.0, %v427
        %v429 = vpop.f32.mrb[0].mxu0
        %v430 = vpop.f32.mrb[0].mxu0
        %v431 = vadd.f32 0.0, %v430
        %v432 = vpop.f32.mrb[0].mxu0
        %433 = vmatprep.mubr.bf16.mxu0 0
        %434 = vmatmul.mubr.bf16.gmra.mrb[0].mxu0 %v295
        %v435 = vpop.f32.mrb[0].mxu0
        %v436 = vadd.f32 0.0, %v435
        %v437 = vpop.f32.mrb[0].mxu0
        %v438 = vpop.f32.mrb[0].mxu0
        %v439 = vadd.f32 0.0, %v438
        %v440 = vpop.f32.mrb[0].mxu0
        %441 = vmatprep.mubr.bf16.mxu0 0
        %442 = vmatmul.mubr.bf16.gmra.mrb[0].mxu0 %v296
        %v443 = vpop.f32.mrb[0].mxu0
        %v444 = vadd.f32 0.0, %v443
        %v445 = vpop.f32.mrb[0].mxu0
        %v446 = vpop.f32.mrb[0].mxu0
        %v447 = vadd.f32 0.0, %v446
        %v448 = vpop.f32.mrb[0].mxu0
        %449 = vdwg.mxu0
        %v450 = vadd.f32 %v205, %v388
        %v451 = vadd.f32 %v206, %v391
        %v452 = vadd.f32 %v207, %v396
        %v453 = vadd.f32 %v208, %v399
        %v454 = vadd.f32 %v209, %v404
        %v455 = vadd.f32 %v210, %v407
        %v456 = vadd.f32 %v211, %v412
        %v457 = vadd.f32 %v212, %v415
        %v458 = vadd.f32 %v213, %v420
        %v459 = vadd.f32 %v214, %v423
        %v460 = vadd.f32 %v215, %v428
        %v461 = vadd.f32 %v216, %v431
        %v462 = vadd.f32 %v217, %v436
        %v463 = vadd.f32 %v218, %v439
        %v464 = vadd.f32 %v219, %v444
        %v465 = vadd.f32 %v220, %v447
        %vm466 = vcmask 261120
        %467 = vst.msk [vmem:[%s180] sm:$0xff] %vm466, %v450
        %468 = vst.msk [vmem:[%s180 + $0x8] sm:$0xff] %vm466, %v451
        %469 = vst.msk [vmem:[%s180 + $0x10] sm:$0xff] %vm466, %v452
        %470 = vst.msk [vmem:[%s180 + $0x18] sm:$0xff] %vm466, %v453
        %471 = vst.msk [vmem:[%s180 + $0x20] sm:$0xff] %vm466, %v454
        %472 = vst.msk [vmem:[%s180 + $0x28] sm:$0xff] %vm466, %v455
        %473 = vst.msk [vmem:[%s180 + $0x30] sm:$0xff] %vm466, %v456
        %474 = vst.msk [vmem:[%s180 + $0x38] sm:$0xff] %vm466, %v457
        %475 = vst.msk [vmem:[%s180 + $0x40] sm:$0xff] %vm466, %v458
        %476 = vst.msk [vmem:[%s180 + $0x48] sm:$0xff] %vm466, %v459
        %477 = vst.msk [vmem:[%s180 + $0x50] sm:$0xff] %vm466, %v460
        %478 = vst.msk [vmem:[%s180 + $0x58] sm:$0xff] %vm466, %v461
        %479 = vst.msk [vmem:[%s180 + $0x60] sm:$0xff] %vm466, %v462
        %480 = vst.msk [vmem:[%s180 + $0x68] sm:$0xff] %vm466, %v463
        %481 = vst.msk [vmem:[%s180 + $0x70] sm:$0xff] %vm466, %v464
        %482 = vst.msk [vmem:[%s180 + $0x78] sm:$0xff] %vm466, %v465
        %s483 = smul.u32 16, %s20
        %p484 = scmp.lt.s32.totalorder %s483, 31
        %s485 = scalar_select %p484, %s483, 31
        %s486 = smul.addr %s485, 8
        %s487 = scalar_lea.vmem %s2, %s486
        // Predicated region
        $region37: #{lightgcn_propagate.1} parent=27 // pred_check
          %p488 = pneg %p95
        $region38: #{lightgcn_propagate.1} parent=27 // pred_check_branch
          %490 = sbr.rel (%p488) target = $region40
        $region39: #{lightgcn_propagate.1} parent=27 // pred_region
          %s491 = smul.u32 16, %s20
        $region40: #{lightgcn_propagate.1} parent=27 // pred_fallthru
          _
      $region28: #{lightgcn_propagate.1} parent=5 // pred_fallthru
        _
      %p492 = scmp.le.s32.totalorder 2, %s11
      // Predicated region
      $region41: #{lightgcn_propagate.1} parent=5 // pred_check
        %p493 = pneg %p492
      $region42: #{lightgcn_propagate.1} parent=5 // pred_check_branch
        %495 = sbr.rel (%p493) target = $region44
      $region43: #{lightgcn_propagate.1} parent=5 // pred_region
        %s496 = ssub.s32 %s11, 2
        // Predicated region
        $region45: #{lightgcn_propagate.1} parent=43 // pred_check
          %p497 = pneg %p101
        $region46: #{lightgcn_propagate.1} parent=43 // pred_check_branch
          %499 = sbr.rel (%p497) target = $region48
        $region47: #{lightgcn_propagate.1} parent=43 // pred_region
          %s500 = smul.u32 16, %s22
          %p501 = scmp.lt.s32.totalorder %s500, 31
          %s502 = scalar_select %p501, %s500, 31
          %s503 = smul.addr %s502, 8
          %s504 = scalar_lea.vmem %s2, %s503
        $region48: #{lightgcn_propagate.1} parent=43 // pred_fallthru
          _
      $region44: #{lightgcn_propagate.1} parent=5 // pred_fallthru
        _
    $region6: #{lightgcn_propagate.1} parent=1 // loop_footer
      %s15 = sadd.s32 1, %s11
    $region7: #{lightgcn_propagate.1} parent=1 // loop_footer_branch
      %10 = sbr.rel target = $region3
    $region8: #{lightgcn_propagate.1} parent=1 // loop_exit
      _
    %505 = vsyncpa [#allocation3], 1
    %s506 = scalar_lea.sflag [#allocation3], 1
    %507 = vsyncpa %s506, 1

</llo_original>
